<compile_context>
chip_gen: v5e
topology: v5e:2x2
jax: 0.10.0
libtpu: 0.0.40
codegen_flags: <defaults>
</compile_context>

<pallas_src>
import functools

import jax
import jax.numpy as jnp
from jax.experimental import pallas as pl
from jax.experimental.pallas import tpu as pltpu


def _round_up(x: int, m: int) -> int:
    return ((x + m - 1) // m) * m


def _vmem_budget_bytes():
    """(input-tile buffer budget, scoped VMEM limit) sized per TPU generation.

    Conservative fallback assumes the smallest VMEM among supported chips
    (v7x: 64 MiB per TensorCore); v5e/v6e (128 MiB) get a larger budget.
    """
    cap = 64 << 20
    try:
        info = pltpu.get_tpu_info()
        cap = int(getattr(info, "vmem_capacity_bytes", cap))
    except Exception:
        pass
    buf_budget = min(cap // 2, 64 << 20) - (8 << 20)   # ~24 MiB on v7x, ~56 MiB on v5e/v6e
    vmem_limit = min(cap - (16 << 20), 96 << 20)       # 48 MiB on v7x,  96 MiB on v5e/v6e
    return max(buf_budget, 8 << 20), max(vmem_limit, 32 << 20)


def _cwd_kernel(s_ref, t_ref, o_ref, *, temperature):
    """One grid step: a (TR, S) tile of (batch*channel) rows -> scalar partial KL sum."""
    inv_t = jnp.float32(1.0 / temperature)
    s = s_ref[...].astype(jnp.float32) * inv_t   # student logits / T
    t = t_ref[...].astype(jnp.float32) * inv_t   # teacher logits / T

    # Teacher softmax statistics along the spatial (lane) axis.
    t_shift = t - jnp.max(t, axis=-1, keepdims=True)
    t_exp = jnp.exp(t_shift)
    t_sum = jnp.sum(t_exp, axis=-1, keepdims=True)              # (TR, 1)

    # Student log-softmax statistics.
    s_shift = s - jnp.max(s, axis=-1, keepdims=True)
    s_sum = jnp.sum(jnp.exp(s_shift), axis=-1, keepdims=True)   # (TR, 1)

    # Row-wise nn.KLDivLoss(reduction='sum'):
    #   sum_j p_j * (log p_j - log q_j)
    #     = (1/t_sum) * sum_j t_exp_j * (t_shift_j - s_shift_j) + log(s_sum) - log(t_sum)
    # The per-row broadcast terms are hoisted out of the per-element work: no per-element
    # divide, and no where-guard (all terms are finite; t_exp_j == 0 kills the product).
    row_dot = jnp.sum(t_exp * (t_shift - s_shift), axis=-1, keepdims=True)
    row_kl = row_dot / t_sum + (jnp.log(s_sum) - jnp.log(t_sum))

    # Per-block partial sum (finalized in the wrapper). Disjoint output blocks per grid
    # step keep the grid axis safely 'parallel' (megacore sharding on v7x).
    o_ref[0, 0] = jnp.sum(row_kl)


def channel_wise_kd_loss(student_preds, teacher_preds, temperature: float = 4.0):
    """Pallas implementation of ChannelWiseKnowledgeDistillationLoss.forward
    (normalization_mode='channel_wise', ignore_index=None)."""
    B, C, H, W = student_preds.shape
    assert teacher_preds.shape == student_preds.shape
    R, S = B * C, H * W

    dtype = student_preds.dtype  # bf16 inputs stream half the HBM bytes; kernel upcasts.
    s2 = student_preds.reshape(R, S)
    t2 = teacher_preds.reshape(R, S).astype(dtype)

    # --- tile sizing: largest row tile whose double-buffered inputs fit the VMEM budget ---
    buf_budget, vmem_limit = _vmem_budget_bytes()
    itemsize = jnp.dtype(dtype).itemsize
    row_align = max(8, 32 // itemsize)                 # 8 for f32, 16 for bf16, 32 for int8
    lane_padded_s = _round_up(S, 128)                  # lane padding the DMA actually moves
    bytes_per_row = 2 * 2 * lane_padded_s * itemsize   # 2 inputs x 2 pipeline buffers
    tr_cap = max(row_align, (buf_budget // bytes_per_row) // row_align * row_align)
    TR = int(min(tr_cap, _round_up(R, row_align)))
    R_pad = _round_up(R, TR)

    # Pad rows with zeros (student == teacher == 0 rows contribute exactly 0 KL) so any
    # B*C works with the tuned tile size instead of a whole-array fallback block.
    if R_pad != R:
        zeros = jnp.zeros((R_pad - R, S), dtype=dtype)
        s2 = jnp.concatenate([s2, zeros], axis=0)
        t2 = jnp.concatenate([t2, zeros], axis=0)

    num_blocks = R_pad // TR
    kernel = functools.partial(_cwd_kernel, temperature=float(temperature))

    partials = pl.pallas_call(
        kernel,
        out_shape=jax.ShapeDtypeStruct((num_blocks, 1), jnp.float32),
        grid_spec=pltpu.PrefetchScalarGridSpec(
            num_scalar_prefetch=0,
            grid=(num_blocks,),
            in_specs=[
                pl.BlockSpec((TR, S), lambda i: (i, 0)),
                pl.BlockSpec((TR, S), lambda i: (i, 0)),
            ],
            out_specs=pl.BlockSpec(
                (1, 1), lambda i: (i, 0), memory_space=pltpu.MemorySpace.SMEM
            ),
        ),
        compiler_params=pltpu.CompilerParams(
            dimension_semantics=("parallel",),
            vmem_limit_bytes=int(vmem_limit),
        ),
    )(s2, t2)

    scale = jnp.float32(temperature * temperature / (B * C))
    return jnp.sum(partials) * scale


def _reference_loss(student_preds, teacher_preds, temperature: float = 4.0):
    """Pure-JAX reference matching the PyTorch forward (channel_wise, ignore_index=None)."""
    B, C, H, W = student_preds.shape
    T = temperature
    sv = student_preds.astype(jnp.float32).reshape(B, C, -1) / T
    tv = teacher_preds.astype(jnp.float32).reshape(B, C, -1) / T
    p = jax.nn.softmax(tv, axis=-1)
    log_p = jax.nn.log_softmax(tv, axis=-1)
    log_q = jax.nn.log_softmax(sv, axis=-1)
    kl = p * (log_p - log_q)
    return jnp.sum(kl) * (T ** 2) / (B * C)


if __name__ == "__main__":
    key = jax.random.PRNGKey(0)

    # Case 1: B*C divisible by the row alignment (no padding path).
    B, C, H, W = 2, 4, 16, 16
    k_s, k_t, key = jax.random.split(key, 3)
    student = jax.random.normal(k_s, (B, C, H, W), dtype=jnp.float32) * 3.0
    teacher = jax.random.normal(k_t, (B, C, H, W), dtype=jnp.float32) * 3.0
    loss = jax.block_until_ready(channel_wise_kd_loss(student, teacher, temperature=4.0))
    ref = _reference_loss(student, teacher, temperature=4.0)
    assert jnp.allclose(loss, ref, rtol=1e-4, atol=1e-5), (loss, ref)

    # Case 2: B*C NOT divisible by 8 (exercises the zero-row padding path).
    B2, C2, H2, W2 = 1, 3, 16, 8
    k_s2, k_t2, key = jax.random.split(key, 3)
    student2 = jax.random.normal(k_s2, (B2, C2, H2, W2), dtype=jnp.float32) * 2.0
    teacher2 = jax.random.normal(k_t2, (B2, C2, H2, W2), dtype=jnp.float32) * 2.0
    loss2 = jax.block_until_ready(channel_wise_kd_loss(student2, teacher2, temperature=4.0))
    ref2 = _reference_loss(student2, teacher2, temperature=4.0)
    assert jnp.allclose(loss2, ref2, rtol=1e-4, atol=1e-5), (loss2, ref2)

    print("KERNEL_OK")
</pallas_src>

<mosaic_0001>
module attributes {stable_mosaic.version = 11 : i64} {
  func.func @_cwd_kernel(%arg0: i32, %arg1: memref<8x256xf32, #tpu.memory_space<vmem>>, %arg2: memref<8x256xf32, #tpu.memory_space<vmem>>, %arg3: memref<1x1xf32, #tpu.memory_space<smem>>) attributes {dimension_semantics = [#tpu.dimension_semantics<parallel>], iteration_bounds = array<i64: 1>, scalar_prefetch = 0 : i64, scratch_operands = 0 : i64, tpu.core_type = #tpu.core_type<tc>, window_params = [{transform_indices = @transform_0, window_bounds = array<i64: 8, 256>}, {transform_indices = @transform_1, window_bounds = array<i64: 8, 256>}, {transform_indices = @transform_2, window_bounds = array<i64: 1, 1>}]} {
    %c0 = arith.constant 0 : index
    %c0_0 = arith.constant 0 : index
    %0 = vector.load %arg1[%c0, %c0_0] : memref<8x256xf32, #tpu.memory_space<vmem>>, vector<8x256xf32>
    %cst = arith.constant 2.500000e-01 : f32
    %1 = vector.broadcast %cst : f32 to vector<8x256xf32>
    %2 = arith.mulf %0, %1 : vector<8x256xf32>
    %c0_1 = arith.constant 0 : index
    %c0_2 = arith.constant 0 : index
    %3 = vector.load %arg2[%c0_1, %c0_2] : memref<8x256xf32, #tpu.memory_space<vmem>>, vector<8x256xf32>
    %cst_3 = arith.constant 2.500000e-01 : f32
    %4 = vector.broadcast %cst_3 : f32 to vector<8x256xf32>
    %5 = arith.mulf %3, %4 : vector<8x256xf32>
    %cst_4 = arith.constant dense<0xFF800000> : vector<8xf32>
    %6 = vector.multi_reduction <maximumf>, %5, %cst_4 [1] : vector<8x256xf32> to vector<8xf32>
    %7 = vector.shape_cast %6 : vector<8xf32> to vector<8x1xf32>
    %8 = vector.broadcast %7 : vector<8x1xf32> to vector<8x256xf32>
    %9 = arith.subf %5, %8 : vector<8x256xf32>
    %10 = math.exp %9 : vector<8x256xf32>
    %cst_5 = arith.constant dense<0.000000e+00> : vector<8xf32>
    %11 = vector.multi_reduction <add>, %10, %cst_5 [1] : vector<8x256xf32> to vector<8xf32>
    %12 = vector.shape_cast %11 : vector<8xf32> to vector<8x1xf32>
    %cst_6 = arith.constant dense<0xFF800000> : vector<8xf32>
    %13 = vector.multi_reduction <maximumf>, %2, %cst_6 [1] : vector<8x256xf32> to vector<8xf32>
    %14 = vector.shape_cast %13 : vector<8xf32> to vector<8x1xf32>
    %15 = vector.broadcast %14 : vector<8x1xf32> to vector<8x256xf32>
    %16 = arith.subf %2, %15 : vector<8x256xf32>
    %17 = math.exp %16 : vector<8x256xf32>
    %cst_7 = arith.constant dense<0.000000e+00> : vector<8xf32>
    %18 = vector.multi_reduction <add>, %17, %cst_7 [1] : vector<8x256xf32> to vector<8xf32>
    %19 = vector.shape_cast %18 : vector<8xf32> to vector<8x1xf32>
    %20 = arith.subf %9, %16 : vector<8x256xf32>
    %21 = arith.mulf %10, %20 : vector<8x256xf32>
    %cst_8 = arith.constant dense<0.000000e+00> : vector<8xf32>
    %22 = vector.multi_reduction <add>, %21, %cst_8 [1] : vector<8x256xf32> to vector<8xf32>
    %23 = vector.shape_cast %22 : vector<8xf32> to vector<8x1xf32>
    %24 = arith.divf %23, %12 : vector<8x1xf32>
    %25 = math.log %19 : vector<8x1xf32>
    %26 = math.log %12 : vector<8x1xf32>
    %27 = arith.subf %25, %26 : vector<8x1xf32>
    %28 = arith.addf %24, %27 : vector<8x1xf32>
    %29 = vector.shape_cast %28 : vector<8x1xf32> to vector<1x8x1xf32>
    %cst_9 = arith.constant dense<0.000000e+00> : vector<1xf32>
    %30 = vector.multi_reduction <add>, %29, %cst_9 [1, 2] : vector<1x8x1xf32> to vector<1xf32>
    %31 = vector.shape_cast %30 : vector<1xf32> to vector<1x1x1xf32>
    %32 = vector.extract %31[0, 0, 0] : f32 from vector<1x1x1xf32>
    %c0_10 = arith.constant 0 : index
    %c0_11 = arith.constant 0 : index
    %33 = memref.load %arg3[%c0_10, %c0_11] : memref<1x1xf32, #tpu.memory_space<smem>>
    memref.store %32, %arg3[%c0_10, %c0_11] : memref<1x1xf32, #tpu.memory_space<smem>>
    return
  }
  func.func @transform_0(%arg0: i32) -> (i32, i32) {
    %c0_i32 = arith.constant 0 : i32
    %c0_i32_0 = arith.constant 0 : i32
    return %arg0, %c0_i32 : i32, i32
  }
  func.func @transform_1(%arg0: i32) -> (i32, i32) {
    %c0_i32 = arith.constant 0 : i32
    %c0_i32_0 = arith.constant 0 : i32
    return %arg0, %c0_i32 : i32, i32
  }
  func.func @transform_2(%arg0: i32) -> (i32, i32) {
    %c0_i32 = arith.constant 0 : i32
    %c0_i32_0 = arith.constant 0 : i32
    return %arg0, %c0_i32 : i32, i32
  }
}

</mosaic_0001>

<llo_original>
// kernel: tpu_custom_call.1
$region0: #{tpu_custom_call.1}
  #allocation0 [shape = 'u32[]', space=smem, size = 0x4, offset = 0x4, fixed_abs, tag = 'smem constant byte address 0x4 - core index']
  #allocation1 [shape = 'u32[72,128]{1,0:T(1,128)}', space=vmem, size = 0x9000, scoped, tag = 'internal scratch']
  %s0 = inlined_call_operand.hbm [shape: f32[8,256], index: 0, kind: input, shape index: {}]
  %s1 = inlined_call_operand.hbm [shape: f32[8,256], index: 1, kind: input, shape index: {}]
  %s2 = inlined_call_operand.hbm [shape: f32[1,1], index: 2, kind: output, shape index: {}]
  %s3 = sld [smem:[#allocation0]]
  $region26: #{tpu_custom_call.1} parent=0
    _
  %s5 = ssub.s32 1, %s3
  %s6 = scalar_select 0, %s5, %s3
  $region1: #{tpu_custom_call.1} parent=0
    #allocation2 [shape = 'u8[8192]{0}', space=vmem, size = 0x2000, scoped, tag = 'input window, operand 0, single buffered']
    #allocation3 [shape = 's32[1]{0}', space=sflag, size = 0x4, scoped, tag = 'scoped memory for tpu_custom_call.1']
    #allocation4 [shape = 's32[1]{0}', space=sflag, size = 0x4, scoped, tag = 'scoped memory for tpu_custom_call.1']
    #allocation5 [shape = 'u8[8192]{0}', space=vmem, size = 0x2000, scoped, tag = 'input window, operand 1, single buffered']
    #allocation6 [shape = 's32[1]{0}', space=sflag, size = 0x4, scoped, tag = 'scoped memory for tpu_custom_call.1']
    #allocation7 [shape = 'u8[512]{0}', space=smem, size = 0x200, scoped, tag = 'output window, operand 0, single buffered']
    %7 = vsyncpa [#allocation3], 0
    %8 = vsyncpa [#allocation6], 0
    %9 = vsyncpa [#allocation4], 0
    // Predicated region
    $region2: #{tpu_custom_call.1} parent=1 // pred_check
      _
    $region3: #{tpu_custom_call.1} parent=1 // pred_check_branch
      %11 = sbr.rel (0) target = $region5
    $region4: #{tpu_custom_call.1} parent=1 // pred_region
      %13 = vsyncadd [#allocation3], 0
      %s15 = sshll.u32 %s0, 4
      %s16 = int_to_ptr.hbm [resolvable:$true] %s15
      %s17 = sshll.u32 [#allocation2], 4
      %s18 = int_to_ptr.vmem [resolvable:$true] %s17
      %20 = dma.hbm_to_vmem [thread:$0]  %s16, 256, %s18, [#allocation3]
    $region5: #{tpu_custom_call.1} parent=1 // pred_fallthru
      _
    // Predicated region
    $region6: #{tpu_custom_call.1} parent=1 // pred_check
      _
    $region7: #{tpu_custom_call.1} parent=1 // pred_check_branch
      %22 = sbr.rel (0) target = $region9
    $region8: #{tpu_custom_call.1} parent=1 // pred_region
      %24 = vsyncadd [#allocation6], 0
      %s26 = sshll.u32 %s1, 4
      %s27 = int_to_ptr.hbm [resolvable:$true] %s26
      %s28 = sshll.u32 [#allocation5], 4
      %s29 = int_to_ptr.vmem [resolvable:$true] %s28
      %31 = dma.hbm_to_vmem [thread:$0]  %s27, 256, %s29, [#allocation6]
    $region9: #{tpu_custom_call.1} parent=1 // pred_fallthru
      _
    // Predicated region
    $region10: #{tpu_custom_call.1} parent=1 // pred_check
      _
    $region11: #{tpu_custom_call.1} parent=1 // pred_check_branch
      %33 = sbr.rel (0) target = $region13
    $region12: #{tpu_custom_call.1} parent=1 // pred_region
      %35 = dma.done [#allocation3], 256
    $region13: #{tpu_custom_call.1} parent=1 // pred_fallthru
      _
    // Predicated region
    $region14: #{tpu_custom_call.1} parent=1 // pred_check
      _
    $region15: #{tpu_custom_call.1} parent=1 // pred_check_branch
      %37 = sbr.rel (0) target = $region17
    $region16: #{tpu_custom_call.1} parent=1 // pred_region
      %39 = dma.done [#allocation6], 256
    $region17: #{tpu_custom_call.1} parent=1 // pred_fallthru
      _
    %v40 = vld [vmem:[#allocation2] sm:$0xff]
    %v41 = vld [vmem:[#allocation2 + $0x8] sm:$0xff]
    %v42 = vmul.f32 %v40, 0.25
    %v43 = vmul.f32 %v41, 0.25
    %v44 = vld [vmem:[#allocation5] sm:$0xff]
    %v45 = vld [vmem:[#allocation5 + $0x8] sm:$0xff]
    %v46 = vmul.f32 %v44, 0.25
    %v47 = vmul.f32 %v45, 0.25
    %v48 = vmax.f32 %v46, %v47
    %49 = vmax.xlane.f32.xlu0 %v48
    %v50 = vpop.xlane.xlu0 %49
    %v51 = vsub.f32 %v46, %v50
    %v52 = vsub.f32 %v47, %v50
    %v53 = vmul.f32 %v51, 1.442695
    %v54 = vpow.pop %v53
    %v55 = vmul.f32 %v52, 1.442695
    %v56 = vpow.pop %v55
    %v57 = vadd.f32 %v54, %v56
    %58 = vadd.xlane.f32.xlu0 %v57
    %v59 = vpop.xlane.xlu0 %58
    %v60 = vmax.f32 %v42, %v43
    %61 = vmax.xlane.f32.xlu0 %v60
    %v62 = vpop.xlane.xlu0 %61
    %v63 = vsub.f32 %v42, %v62
    %v64 = vsub.f32 %v43, %v62
    %v65 = vmul.f32 %v63, 1.442695
    %v66 = vpow.pop %v65
    %v67 = vmul.f32 %v64, 1.442695
    %v68 = vpow.pop %v67
    %v69 = vadd.f32 %v66, %v68
    %70 = vadd.xlane.f32.xlu0 %v69
    %v71 = vpop.xlane.xlu0 %70
    %v72 = vsub.f32 %v51, %v63
    %v73 = vsub.f32 %v52, %v64
    %v74 = vmul.f32 %v54, %v72
    %v75 = vmul.f32 %v56, %v73
    %v76 = vadd.f32 %v74, %v75
    %77 = vadd.xlane.f32.xlu0 %v76
    %v78 = vpop.xlane.xlu0 %77
    %v79 = vrcp.pop %v59
    %v80 = vmul.f32 %v59, %v79
    %v81 = vsub.f32 1.0, %v80
    %v82 = vmul.f32 %v79, %v81
    %v83 = vadd.f32 %v79, %v82
    %vm84 = vweird.f32 %v59
    %vm85 = vweird.f32 %v79
    %vm86 = vmor %vm84, %vm85
    %v87 = vsel %vm86, %v79, %v83
    %v88 = vand.u32 2147483647, %v59
    %vm89 = vcmp.eq.f32.partialorder %v88, 8.507059e+37
    %v90 = vand.u32 %v59, 2147483648
    %v91 = vor.u32 1.1754944e-38, %v90
    %v92 = vsel %vm89, %v91, %v87
    %v93 = vmul.f32 %v78, %v92
    %v94 = vlog2.pop %v71
    %v95 = vmul.f32 %v94, 0.6931472
    %v96 = vlog2.pop %v59
    %v97 = vmul.f32 %v96, 0.6931472
    %v98 = vsub.f32 %v95, %v97
    %v99 = vadd.f32 %v93, %v98
    %vm100 = vcmask 7168
    %v101 = vsel %vm100, %v99, 0.0
    %102 = vadd.xlane.f32.xlu0 %v101
    %v103 = vpop.xlane.xlu0 %102
    %v104 = vrot.slane %v103, 4
    %v105 = vadd.f32 %v103, %v104
    %v106 = vrot.slane %v105, 2
    %v107 = vadd.f32 %v105, %v106
    %v108 = vrot.slane %v107, 1
    %v109 = vadd.f32 %v107, %v108
    %s110 = vtos %v109
    %s111 = scalar_lea.smem [#allocation7], 0
    %112 = sst [smem:[%s111]] %s110
    // Predicated region
    $region18: #{tpu_custom_call.1} parent=1 // pred_check
      _
    $region19: #{tpu_custom_call.1} parent=1 // pred_check_branch
      %114 = sbr.rel (0) target = $region21
    $region20: #{tpu_custom_call.1} parent=1 // pred_region
      %116 = vsyncadd [#allocation4], 0
      %s118 = sshll.u32 %s2, 4
      %s119 = int_to_ptr.hbm [resolvable:$true] %s118
      %121 = dma.smem_to_hbm [#allocation7], 16, %s119, [#allocation4]
    $region21: #{tpu_custom_call.1} parent=1 // pred_fallthru
      _
    // Predicated region
    $region22: #{tpu_custom_call.1} parent=1 // pred_check
      _
    $region23: #{tpu_custom_call.1} parent=1 // pred_check_branch
      %123 = sbr.rel (0) target = $region25
    $region24: #{tpu_custom_call.1} parent=1 // pred_region
      %125 = dma.done [#allocation4], 16
    $region25: #{tpu_custom_call.1} parent=1 // pred_fallthru
      _
    %126 = sfence
    %127 = vsyncpa [#allocation3], 1
    %128 = vsyncpa [#allocation6], 1
    %129 = vsyncpa [#allocation4], 1

</llo_original>
